<compile_context>
chip_gen: v6e
topology: v6e:2x2x1
jax: 0.10.0
libtpu: 0.0.40
codegen_flags: <defaults>
</compile_context>

<pallas_src>
import functools

import jax
import jax.numpy as jnp
from jax.experimental import pallas as pl
from jax.experimental.pallas import tpu as pltpu

_LANES = 128
_NEG_BIG = -1e30          # plain Python float -> jaxpr literal (NOT a captured constant)
_TARGET_BLOCK_BYTES = 4 * 1024 * 1024
_MAX_BT = 256             # keeps the unrolled scratch-copy loop / vreg pressure bounded


def _attn_classifier_kernel(hs_ref, mask_ref, wa_ref, wf_ref, bf_ref, out_ref, h_ref):
    # hs_ref:   (bt, S, H)  native dtype  hidden states for this block of batch rows
    # mask_ref: (bt, 1, S)  bf16          1.0 == masked-out position
    # wa_ref:   (1, 1, H)   hs dtype      attention projection weight
    # wf_ref:   (H, Cp)     f32           classifier weight (pre-transposed, lane-padded)
    # bf_ref:   (1, Cp)     f32           classifier bias   (lane-padded)
    # out_ref:  (bt, Cp)    f32           logits (lane-dense)
    # h_ref:    (bt, H)     f32 scratch   pooled hidden states
    hs = hs_ref[...]
    bt, _, H = hs.shape

    # Attention logits on the MXU with f32 accumulation -> (bt, 1, S), lane-major in S.
    wa = jnp.broadcast_to(wa_ref[...], (bt, 1, H))
    s = jnp.einsum("bqd,bkd->bqk", wa, hs, preferred_element_type=jnp.float32)
    s = jnp.where(mask_ref[...] > 0.5, _NEG_BIG, s)

    # Numerically stable softmax along lanes (the sequence axis).
    m = jnp.max(s, axis=-1, keepdims=True)                        # (bt, 1, 1)
    e = jnp.exp(s - m)                                            # (bt, 1, S)
    denom = jnp.sum(e, axis=-1, keepdims=True)                    # (bt, 1, 1)
    p = (e * pl.reciprocal(denom, approx=True)).astype(hs.dtype)  # (bt, 1, S)

    # Batched attention pooling on the MXU -> (bt, 1, H), f32 accumulation.
    pooled = jnp.einsum("bqk,bkd->bqd", p, hs, preferred_element_type=jnp.float32)

    # Gather the per-row (1, H) results into a (bt, H) VMEM scratch (cheap
    # lane-dense VMEM stores, leading-dim indexing only), then ONE classifier
    # matmul and ONE full-block, unmasked (bt, Cp) store.
    for b in range(bt):                       # bt is static & small -> fully unrolls
        h_ref[pl.ds(b, 1), :] = pooled[b]
    out_ref[...] = (
        jnp.dot(h_ref[...], wf_ref[...], preferred_element_type=jnp.float32)
        + bf_ref[...]
    ).astype(out_ref.dtype)


def _choose_bt(B, S, H, itemsize, vmem_budget):
    """Batch-block size: ~4 MiB of hidden-state per block, multiple of 8, VMEM-aware."""
    row_bytes = max(1, S * H * itemsize)
    target = max(1, (_TARGET_BLOCK_BYTES + row_bytes - 1) // row_bytes)
    fit = max(1, (vmem_budget // 2) // (2 * row_bytes))   # double-buffered hs <= ~half budget
    bt = min(target, fit, _MAX_BT)
    if bt >= 8:
        bt = (bt // 8) * 8
    bt = max(1, bt)
    if B <= bt:
        # Small batch: one block covering the whole batch.  On v7x (2 TCs) split
        # into two blocks when sublane alignment allows so both cores get work.
        if B >= 16 and B % 16 == 0:
            return B // 2
        return B
    if bt < 8:
        bt = 8  # keep output blocks sublane-aligned; VMEM edge case for huge S*H
    return bt


@jax.jit
def attention_classifier(hidden_states, mask_bool, w_attn, w_fc, b_fc):
    """hidden_states: (B, S, H) f32 or bf16; mask_bool: (B, S) bool (True == masked);
    w_attn: (1, H) [Linear(H,1,bias=False).weight]; w_fc: (C, H); b_fc: (C,).
    Returns (B, C) f32 logits."""
    B, S, H = hidden_states.shape
    C = w_fc.shape[0]
    dt = hidden_states.dtype
    itemsize = jnp.dtype(dt).itemsize

    # Generation-aware VMEM budget (v5e/v6e: 128 MiB, v7x: 64 MiB per core).
    try:
        vmem_cap = int(pltpu.get_tpu_info().vmem_capacity_bytes)
    except Exception:
        vmem_cap = 64 * 1024 * 1024          # conservative fallback (v7x-safe)
    vmem_budget = vmem_cap * 3 // 4

    bt = _choose_bt(B, S, H, itemsize, vmem_budget)
    n_blocks = (B + bt - 1) // bt
    b_pad = n_blocks * bt
    c_pad = max(_LANES, ((C + _LANES - 1) // _LANES) * _LANES)

    # The dominant (B, S, H) stream is passed through untouched (no cast / no pad).
    hs = hidden_states

    # Tiny side inputs: mask lane-major as bf16 (padded rows fully masked for a
    # ragged last block), attention weight as (1,1,H) broadcast in-kernel,
    # classifier weight pre-transposed + lane-padded to a dense 128-wide output.
    mask_f = mask_bool.astype(jnp.bfloat16).reshape(B, 1, S)
    if b_pad != B:
        mask_f = jnp.pad(mask_f, ((0, b_pad - B), (0, 0), (0, 0)), constant_values=1.0)
    wa = w_attn.reshape(1, 1, H).astype(dt)
    wf_t = jnp.zeros((H, c_pad), jnp.float32).at[:, :C].set(jnp.asarray(w_fc, jnp.float32).T)
    bf = jnp.zeros((1, c_pad), jnp.float32).at[:, :C].set(
        jnp.asarray(b_fc, jnp.float32).reshape(1, C))

    # VMEM limit derived from the actual block bytes (2x for double buffering),
    # capped by the per-generation physical budget.
    block_bytes = (bt * S * H * itemsize          # hs block
                   + bt * S * 2                   # mask block (bf16)
                   + H * itemsize                 # wa
                   + H * c_pad * 4 + c_pad * 4    # wf, bf
                   + bt * c_pad * 4)              # out block
    needed = 2 * block_bytes + bt * H * 4         # + scratch
    vmem_limit = min(vmem_budget, max(32 * 1024 * 1024, 2 * needed))

    out = pl.pallas_call(
        _attn_classifier_kernel,
        out_shape=jax.ShapeDtypeStruct((b_pad, c_pad), jnp.float32),
        grid=(n_blocks,),
        in_specs=[
            pl.BlockSpec((bt, S, H), lambda i: (i, 0, 0)),   # hidden-state block (native dtype)
            pl.BlockSpec((bt, 1, S), lambda i: (i, 0, 0)),   # mask block (lane-major, bf16)
            pl.BlockSpec((1, 1, H), lambda i: (0, 0, 0)),    # shared attention weight
            pl.BlockSpec((H, c_pad), lambda i: (0, 0)),      # shared classifier weight
            pl.BlockSpec((1, c_pad), lambda i: (0, 0)),      # shared classifier bias
        ],
        out_specs=pl.BlockSpec((bt, c_pad), lambda i: (i, 0)),
        scratch_shapes=[pltpu.VMEM((bt, H), jnp.float32)],   # pooled hidden states
        compiler_params=pltpu.CompilerParams(
            dimension_semantics=("parallel",),               # megacore-friendly batch axis
            vmem_limit_bytes=int(vmem_limit),
        ),
    )(hs, mask_f, wa, wf_t, bf)
    return out[:B, :C]


def _reference(hidden_states, mask_bool, w_attn, w_fc, b_fc):
    hs = hidden_states.astype(jnp.float32)
    q = jnp.einsum("bsh,h->bs", hs, jnp.asarray(w_attn, jnp.float32).reshape(-1))
    q = jnp.where(mask_bool, -jnp.inf, q)
    w = jax.nn.softmax(q, axis=-1)
    h = jnp.einsum("bs,bsh->bh", w, hs)
    return h @ jnp.asarray(w_fc, jnp.float32).T + jnp.asarray(b_fc, jnp.float32)


if __name__ == "__main__":
    B, S, H, C = 2, 8, 32, 4

    key = jax.random.PRNGKey(0)
    k_hs, k_wa, k_wf, k_bf = jax.random.split(key, 4)

    hidden_states = jax.random.normal(k_hs, (B, S, H), dtype=jnp.float32)

    # Deterministic parameter init (PyTorch Linear-style uniform bounds).
    bound = 1.0 / (H ** 0.5)
    w_attn = jax.random.uniform(k_wa, (1, H), minval=-bound, maxval=bound,
                                dtype=jnp.float32)            # Linear(H, 1, bias=False)
    w_fc = jax.random.uniform(k_wf, (C, H), minval=-bound, maxval=bound,
                              dtype=jnp.float32)              # Linear(H, C).weight
    b_fc = jax.random.uniform(k_bf, (C,), minval=-bound, maxval=bound,
                              dtype=jnp.float32)              # Linear(H, C).bias

    # Boolean padding mask: True == masked (filled with a large negative before softmax).
    lengths = jnp.array([5, 7], dtype=jnp.int32)
    positions = jnp.arange(S, dtype=jnp.int32)[None, :]
    mask_bool = positions >= lengths[:, None]                 # (B, S) bool

    out = attention_classifier(hidden_states, mask_bool, w_attn, w_fc, b_fc)
    out = jax.block_until_ready(out)

    ref = _reference(hidden_states, mask_bool, w_attn, w_fc, b_fc)
    assert out.shape == (B, C), out.shape
    assert bool(jnp.all(jnp.isfinite(out)))
    # Approx EUP reciprocal in the softmax denominator => relaxed tolerance.
    assert jnp.allclose(out, ref, atol=2e-2, rtol=2e-2), (out, ref)

    print("KERNEL_OK")
</pallas_src>

<mosaic_0001>
module attributes {stable_mosaic.version = 11 : i64} {
  func.func @_attn_classifier_kernel(%arg0: i32, %arg1: memref<2x8x32xf32, #tpu.memory_space<vmem>>, %arg2: memref<2x1x8xbf16, #tpu.memory_space<vmem>>, %arg3: memref<1x1x32xf32, #tpu.memory_space<vmem>>, %arg4: memref<32x128xf32, #tpu.memory_space<vmem>>, %arg5: memref<1x128xf32, #tpu.memory_space<vmem>>, %arg6: memref<2x128xf32, #tpu.memory_space<vmem>>, %arg7: memref<2x32xf32, #tpu.memory_space<vmem>>) attributes {dimension_semantics = [#tpu.dimension_semantics<parallel>], iteration_bounds = array<i64: 1>, scalar_prefetch = 0 : i64, scratch_operands = 1 : i64, tpu.core_type = #tpu.core_type<tc>, window_params = [{transform_indices = @transform_0, window_bounds = array<i64: 2, 8, 32>}, {transform_indices = @transform_1, window_bounds = array<i64: 2, 1, 8>}, {pipeline_mode = #tpu.pipeline_mode<synchronous>, transform_indices = @transform_2, window_bounds = array<i64: 1, 1, 32>}, {pipeline_mode = #tpu.pipeline_mode<synchronous>, transform_indices = @transform_3, window_bounds = array<i64: 32, 128>}, {pipeline_mode = #tpu.pipeline_mode<synchronous>, transform_indices = @transform_4, window_bounds = array<i64: 1, 128>}, {transform_indices = @transform_5, window_bounds = array<i64: 2, 128>}]} {
    %c0 = arith.constant 0 : index
    %c0_0 = arith.constant 0 : index
    %c0_1 = arith.constant 0 : index
    %0 = vector.load %arg1[%c0, %c0_0, %c0_1] : memref<2x8x32xf32, #tpu.memory_space<vmem>>, vector<2x8x32xf32>
    %c0_2 = arith.constant 0 : index
    %c0_3 = arith.constant 0 : index
    %c0_4 = arith.constant 0 : index
    %1 = vector.load %arg3[%c0_2, %c0_3, %c0_4] : memref<1x1x32xf32, #tpu.memory_space<vmem>>, vector<1x1x32xf32>
    %2 = vector.shape_cast %1 : vector<1x1x32xf32> to vector<1x1x32xf32>
    %3 = vector.broadcast %2 : vector<1x1x32xf32> to vector<2x1x32xf32>
    "tpu.trace_start"() <{level = 10 : i32, message = "bqd,bkd->bqk"}> : () -> ()
    %cst = arith.constant dense<0.000000e+00> : vector<2x1x8xf32>
    %4 = tpu.matmul %3, %0, %cst {dimension_numbers = #tpu.dot_dimension_numbers<[2], [2], [1], [1], [0, 0, 0, 1, 1, 1], [0], [0]>} : vector<2x1x32xf32>, vector<2x8x32xf32>, vector<2x1x8xf32> -> vector<2x1x8xf32>
    "tpu.trace_stop"() : () -> ()
    %c0_5 = arith.constant 0 : index
    %c0_6 = arith.constant 0 : index
    %c0_7 = arith.constant 0 : index
    %5 = vector.load %arg2[%c0_5, %c0_6, %c0_7] : memref<2x1x8xbf16, #tpu.memory_space<vmem>>, vector<2x1x8xbf16>
    %cst_8 = arith.constant 5.000000e-01 : bf16
    %6 = vector.broadcast %cst_8 : bf16 to vector<2x1x8xbf16>
    %7 = arith.cmpf ogt, %5, %6 : vector<2x1x8xbf16>
    %cst_9 = arith.constant -1.000000e+30 : f32
    %8 = vector.broadcast %cst_9 : f32 to vector<2x1x8xf32>
    %9 = arith.select %7, %8, %4 : vector<2x1x8xi1>, vector<2x1x8xf32>
    %cst_10 = arith.constant dense<0xFF800000> : vector<2x1xf32>
    %10 = vector.multi_reduction <maximumf>, %9, %cst_10 [2] : vector<2x1x8xf32> to vector<2x1xf32>
    %11 = vector.shape_cast %10 : vector<2x1xf32> to vector<2x1x1xf32>
    %12 = vector.broadcast %11 : vector<2x1x1xf32> to vector<2x1x8xf32>
    %13 = arith.subf %9, %12 : vector<2x1x8xf32>
    %14 = math.exp %13 : vector<2x1x8xf32>
    %cst_11 = arith.constant dense<0.000000e+00> : vector<2x1xf32>
    %15 = vector.multi_reduction <add>, %14, %cst_11 [2] : vector<2x1x8xf32> to vector<2x1xf32>
    %16 = vector.shape_cast %15 : vector<2x1xf32> to vector<2x1x1xf32>
    %17 = tpu.reciprocal %16 {approx = true} : vector<2x1x1xf32> -> vector<2x1x1xf32>
    %18 = vector.broadcast %17 : vector<2x1x1xf32> to vector<2x1x8xf32>
    %19 = arith.mulf %14, %18 : vector<2x1x8xf32>
    "tpu.trace_start"() <{level = 10 : i32, message = "bqk,bkd->bqd"}> : () -> ()
    %cst_12 = arith.constant dense<0.000000e+00> : vector<2x1x32xf32>
    %20 = tpu.matmul %19, %0, %cst_12 {dimension_numbers = #tpu.dot_dimension_numbers<[2], [1], [1], [2], [0, 0, 0, 1, 1, 2], [0], [0]>} : vector<2x1x8xf32>, vector<2x8x32xf32>, vector<2x1x32xf32> -> vector<2x1x32xf32>
    "tpu.trace_stop"() : () -> ()
    %21 = vector.extract_strided_slice %20 {offsets = [0, 0, 0], sizes = [1, 1, 32], strides = [1, 1, 1]} : vector<2x1x32xf32> to vector<1x1x32xf32>
    %22 = vector.shape_cast %21 : vector<1x1x32xf32> to vector<1x32xf32>
    %c0_13 = arith.constant 0 : index
    %c0_14 = arith.constant 0 : index
    %23 = vector.load %arg7[%c0_13, %c0_14] : memref<2x32xf32, #tpu.memory_space<vmem>>, vector<1x32xf32>
    tpu.vector_store %arg7[%c0_13, %c0_14], %22 {strides = array<i32>} : memref<2x32xf32, #tpu.memory_space<vmem>>, vector<1x32xf32>,
    %24 = vector.extract_strided_slice %20 {offsets = [1, 0, 0], sizes = [1, 1, 32], strides = [1, 1, 1]} : vector<2x1x32xf32> to vector<1x1x32xf32>
    %25 = vector.shape_cast %24 : vector<1x1x32xf32> to vector<1x32xf32>
    %c1 = arith.constant 1 : index
    %c0_15 = arith.constant 0 : index
    %26 = vector.load %arg7[%c1, %c0_15] : memref<2x32xf32, #tpu.memory_space<vmem>>, vector<1x32xf32>
    tpu.vector_store %arg7[%c1, %c0_15], %25 {strides = array<i32>} : memref<2x32xf32, #tpu.memory_space<vmem>>, vector<1x32xf32>,
    %c0_16 = arith.constant 0 : index
    %c0_17 = arith.constant 0 : index
    %27 = vector.load %arg7[%c0_16, %c0_17] : memref<2x32xf32, #tpu.memory_space<vmem>>, vector<2x32xf32>
    %c0_18 = arith.constant 0 : index
    %c0_19 = arith.constant 0 : index
    %28 = vector.load %arg4[%c0_18, %c0_19] : memref<32x128xf32, #tpu.memory_space<vmem>>, vector<32x128xf32>
    %cst_20 = arith.constant dense<0.000000e+00> : vector<2x128xf32>
    %29 = tpu.matmul %27, %28, %cst_20 {dimension_numbers = #tpu.dot_dimension_numbers<[1], [0], [0], [1], [0, 0, 1, 1], [], []>} : vector<2x32xf32>, vector<32x128xf32>, vector<2x128xf32> -> vector<2x128xf32>
    %c0_21 = arith.constant 0 : index
    %c0_22 = arith.constant 0 : index
    %30 = vector.load %arg5[%c0_21, %c0_22] : memref<1x128xf32, #tpu.memory_space<vmem>>, vector<1x128xf32>
    %31 = vector.broadcast %30 : vector<1x128xf32> to vector<2x128xf32>
    %32 = arith.addf %29, %31 : vector<2x128xf32>
    %c0_23 = arith.constant 0 : index
    %c0_24 = arith.constant 0 : index
    %33 = vector.load %arg6[%c0_23, %c0_24] : memref<2x128xf32, #tpu.memory_space<vmem>>, vector<2x128xf32>
    tpu.vector_store %arg6[%c0_23, %c0_24], %32 {strides = array<i32>} : memref<2x128xf32, #tpu.memory_space<vmem>>, vector<2x128xf32>,
    return
  }
  func.func @transform_0(%arg0: i32) -> (i32, i32, i32) {
    %c0_i32 = arith.constant 0 : i32
    %c0_i32_0 = arith.constant 0 : i32
    %c0_i32_1 = arith.constant 0 : i32
    return %arg0, %c0_i32, %c0_i32_0 : i32, i32, i32
  }
  func.func @transform_1(%arg0: i32) -> (i32, i32, i32) {
    %c0_i32 = arith.constant 0 : i32
    %c0_i32_0 = arith.constant 0 : i32
    %c0_i32_1 = arith.constant 0 : i32
    return %arg0, %c0_i32, %c0_i32_0 : i32, i32, i32
  }
  func.func @transform_2(%arg0: i32) -> (i32, i32, i32) {
    %c0_i32 = arith.constant 0 : i32
    %c0_i32_0 = arith.constant 0 : i32
    %c0_i32_1 = arith.constant 0 : i32
    %c0_i32_2 = arith.constant 0 : i32
    return %c0_i32, %c0_i32_0, %c0_i32_1 : i32, i32, i32
  }
  func.func @transform_3(%arg0: i32) -> (i32, i32) {
    %c0_i32 = arith.constant 0 : i32
    %c0_i32_0 = arith.constant 0 : i32
    %c0_i32_1 = arith.constant 0 : i32
    return %c0_i32, %c0_i32_0 : i32, i32
  }
  func.func @transform_4(%arg0: i32) -> (i32, i32) {
    %c0_i32 = arith.constant 0 : i32
    %c0_i32_0 = arith.constant 0 : i32
    %c0_i32_1 = arith.constant 0 : i32
    return %c0_i32, %c0_i32_0 : i32, i32
  }
  func.func @transform_5(%arg0: i32) -> (i32, i32) {
    %c0_i32 = arith.constant 0 : i32
    %c0_i32_0 = arith.constant 0 : i32
    return %arg0, %c0_i32 : i32, i32
  }
}

</mosaic_0001>

<llo_original>
// kernel: attention_classifier.1
$region0: #{attention_classifier.1}
  #allocation0 [shape = 'u32[]', space=smem, size = 0x4, offset = 0x4, fixed_abs, tag = 'smem constant byte address 0x4 - core index']
  #allocation1 [shape = 'u32[144,128]{1,0:T(1,128)}', space=vmem, size = 0x12000, scoped, tag = 'internal scratch']
  #allocation2 [shape = 'f32[2,32]{1,0:T(2,128)}', space=vmem, size = 0x400, scoped, tag = 'scratch operand']
  %s0 = inlined_call_operand.vmem [shape: f32[2,8,32], index: 0, kind: input, shape index: {}]
  %s1 = inlined_call_operand.vmem [shape: bf16[2,1,8], index: 1, kind: input, shape index: {}]
  %s2 = inlined_call_operand.vmem [shape: f32[1,1,32], index: 2, kind: input, shape index: {}]
  %s3 = inlined_call_operand.vmem [shape: f32[32,128], index: 3, kind: input, shape index: {}]
  %s4 = inlined_call_operand.vmem [shape: f32[1,128], index: 4, kind: input, shape index: {}]
  %s5 = inlined_call_operand.hbm [shape: f32[2,128], index: 5, kind: output, shape index: {}]
  %s6 = sld [smem:[#allocation0]]
  $region30: #{attention_classifier.1} parent=0
    _
  %s8 = ssub.s32 1, %s6
  %s9 = scalar_select 0, %s8, %s6
  $region1: #{attention_classifier.1} parent=0
    #allocation3 [shape = 'u8[1024]{0}', space=vmem, size = 0x400, scoped, tag = 'output window, operand 0, single buffered']
    #allocation4 [shape = 's32[1]{0}', space=sflag, size = 0x4, scoped, tag = 'scoped memory for attention_classifier.1']
    %10 = vsyncpa [#allocation4], 0
    // Predicated region
    $region2: #{attention_classifier.1} parent=1 // pred_check
      _
    $region3: #{attention_classifier.1} parent=1 // pred_check_branch
      %12 = sbr.rel (0) target = $region5
    $region4: #{attention_classifier.1} parent=1 // pred_region
      _
    $region5: #{attention_classifier.1} parent=1 // pred_fallthru
      _
    // Predicated region
    $region6: #{attention_classifier.1} parent=1 // pred_check
      _
    $region7: #{attention_classifier.1} parent=1 // pred_check_branch
      %14 = sbr.rel (0) target = $region9
    $region8: #{attention_classifier.1} parent=1 // pred_region
      _
    $region9: #{attention_classifier.1} parent=1 // pred_fallthru
      _
    // Predicated region
    $region10: #{attention_classifier.1} parent=1 // pred_check
      _
    $region11: #{attention_classifier.1} parent=1 // pred_check_branch
      %16 = sbr.rel (0) target = $region13
    $region12: #{attention_classifier.1} parent=1 // pred_region
      _
    $region13: #{attention_classifier.1} parent=1 // pred_fallthru
      _
    // Predicated region
    $region14: #{attention_classifier.1} parent=1 // pred_check
      _
    $region15: #{attention_classifier.1} parent=1 // pred_check_branch
      %18 = sbr.rel (0) target = $region17
    $region16: #{attention_classifier.1} parent=1 // pred_region
      _
    $region17: #{attention_classifier.1} parent=1 // pred_fallthru
      _
    // Predicated region
    $region18: #{attention_classifier.1} parent=1 // pred_check
      _
    $region19: #{attention_classifier.1} parent=1 // pred_check_branch
      %20 = sbr.rel (0) target = $region21
    $region20: #{attention_classifier.1} parent=1 // pred_region
      _
    $region21: #{attention_classifier.1} parent=1 // pred_fallthru
      _
    %v24 = vld [vmem:[%s0] sm:$0xff]
    %v25 = vld [vmem:[%s0 + $0x8] sm:$0xff]
    %v26 = vld [vmem:[%s2] sm:$0x1]
    %vm27 = vcmask 261120
    %v29 = vsel %vm27, %v26, 0
    %v32 = vsel %vm27, %v24, 0
    %34 = vmatprep.subr.mxu0 0.0
    %35 = vmatpush1.xpose.msra.mxu0 0.0
    %36 = vmatprep.subr.mxu0 0.0
    %37 = vmatpush1.xpose.msra.mxu0 0.0
    %38 = vmatprep.subr.mxu0 0.0
    %39 = vmatpush1.xpose.msra.mxu0 0.0
    %40 = vmatprep.subr.mxu0 0.0
    %41 = vmatpush1.xpose.msra.mxu0 0.0
    %42 = vmatprep.subr.mxu0 0.0
    %43 = vmatpush1.xpose.msra.mxu0 0.0
    %44 = vmatprep.subr.mxu0 0.0
    %45 = vmatpush1.xpose.msra.mxu0 0.0
    %46 = vmatprep.subr.mxu0 0.0
    %47 = vmatpush1.xpose.msra.mxu0 0.0
    %48 = vmatprep.subr.mxu0 0.0
    %49 = vmatpush1.xpose.msra.mxu0 0.0
    %50 = vmatprep.subr.mxu0 0.0
    %51 = vmatpush1.xpose.msra.mxu0 0.0
    %52 = vmatprep.subr.mxu0 0.0
    %53 = vmatpush1.xpose.msra.mxu0 0.0
    %54 = vmatprep.subr.mxu0 0.0
    %55 = vmatpush1.xpose.msra.mxu0 0.0
    %56 = vmatprep.subr.mxu0 0.0
    %57 = vmatpush1.xpose.msra.mxu0 0.0
    %58 = vmatprep.subr.mxu0 0.0
    %59 = vmatpush1.xpose.msra.mxu0 0.0
    %60 = vmatprep.subr.mxu0 0.0
    %61 = vmatpush1.xpose.msra.mxu0 0.0
    %62 = vmatprep.subr.mxu0 0.0
    %63 = vmatpush1.xpose.msra.mxu0 0.0
    %64 = vmatprep.subr.mxu0 0.0
    %65 = vmatpush1.xpose.msra.mxu0 %v32
    %66 = vmatprep.subr.mxu0 0.0
    %67 = vmatpush2.xpose.msra.mxu0 0.0
    %68 = vmatprep.subr.mxu0 0.0
    %69 = vmatpush2.xpose.msra.mxu0 0.0
    %70 = vmatprep.subr.mxu0 0.0
    %71 = vmatpush2.xpose.msra.mxu0 0.0
    %72 = vmatprep.subr.mxu0 0.0
    %73 = vmatpush2.xpose.msra.mxu0 0.0
    %74 = vmatprep.subr.mxu0 0.0
    %75 = vmatpush2.xpose.msra.mxu0 0.0
    %76 = vmatprep.subr.mxu0 0.0
    %77 = vmatpush2.xpose.msra.mxu0 0.0
    %78 = vmatprep.subr.mxu0 0.0
    %79 = vmatpush2.xpose.msra.mxu0 0.0
    %80 = vmatprep.subr.mxu0 0.0
    %81 = vmatpush2.xpose.msra.mxu0 0.0
    %82 = vmatprep.subr.mxu0 0.0
    %83 = vmatpush2.xpose.msra.mxu0 0.0
    %84 = vmatprep.subr.mxu0 0.0
    %85 = vmatpush2.xpose.msra.mxu0 0.0
    %86 = vmatprep.subr.mxu0 0.0
    %87 = vmatpush2.xpose.msra.mxu0 0.0
    %88 = vmatprep.subr.mxu0 0.0
    %89 = vmatpush2.xpose.msra.mxu0 0.0
    %90 = vmatprep.subr.mxu0 0.0
    %91 = vmatpush2.xpose.msra.mxu0 0.0
    %92 = vmatprep.subr.mxu0 0.0
    %93 = vmatpush2.xpose.msra.mxu0 0.0
    %94 = vmatprep.subr.mxu0 0.0
    %95 = vmatpush2.xpose.msra.mxu0 0.0
    %96 = vmatprep.subr.mxu0 0.0
    %97 = vmatpush2.xpose.msra.mxu0 0.0
    %98 = vmatprep.mubr.f32.mxu0 0.0
    %99 = vmatmul.mubr.f32.gmra.mxu0 %v29
    %v100 = vpop.f32.mrf.mxu0
    %v101 = vadd.f32 0.0, %v100
    %v102 = vpop.f32.mrf.mxu0
    %103 = vdwg.mxu0
    %v105 = vsel %vm27, %v25, 0
    %107 = vmatprep.subr.mxu0 0.0
    %108 = vmatpush1.xpose.msra.mxu0 0.0
    %109 = vmatprep.subr.mxu0 0.0
    %110 = vmatpush1.xpose.msra.mxu0 0.0
    %111 = vmatprep.subr.mxu0 0.0
    %112 = vmatpush1.xpose.msra.mxu0 0.0
    %113 = vmatprep.subr.mxu0 0.0
    %114 = vmatpush1.xpose.msra.mxu0 0.0
    %115 = vmatprep.subr.mxu0 0.0
    %116 = vmatpush1.xpose.msra.mxu0 0.0
    %117 = vmatprep.subr.mxu0 0.0
    %118 = vmatpush1.xpose.msra.mxu0 0.0
    %119 = vmatprep.subr.mxu0 0.0
    %120 = vmatpush1.xpose.msra.mxu0 0.0
    %121 = vmatprep.subr.mxu0 0.0
    %122 = vmatpush1.xpose.msra.mxu0 0.0
    %123 = vmatprep.subr.mxu0 0.0
    %124 = vmatpush1.xpose.msra.mxu0 0.0
    %125 = vmatprep.subr.mxu0 0.0
    %126 = vmatpush1.xpose.msra.mxu0 0.0
    %127 = vmatprep.subr.mxu0 0.0
    %128 = vmatpush1.xpose.msra.mxu0 0.0
    %129 = vmatprep.subr.mxu0 0.0
    %130 = vmatpush1.xpose.msra.mxu0 0.0
    %131 = vmatprep.subr.mxu0 0.0
    %132 = vmatpush1.xpose.msra.mxu0 0.0
    %133 = vmatprep.subr.mxu0 0.0
    %134 = vmatpush1.xpose.msra.mxu0 0.0
    %135 = vmatprep.subr.mxu0 0.0
    %136 = vmatpush1.xpose.msra.mxu0 0.0
    %137 = vmatprep.subr.mxu0 0.0
    %138 = vmatpush1.xpose.msra.mxu0 %v105
    %139 = vmatprep.subr.mxu0 0.0
    %140 = vmatpush2.xpose.msra.mxu0 0.0
    %141 = vmatprep.subr.mxu0 0.0
    %142 = vmatpush2.xpose.msra.mxu0 0.0
    %143 = vmatprep.subr.mxu0 0.0
    %144 = vmatpush2.xpose.msra.mxu0 0.0
    %145 = vmatprep.subr.mxu0 0.0
    %146 = vmatpush2.xpose.msra.mxu0 0.0
    %147 = vmatprep.subr.mxu0 0.0
    %148 = vmatpush2.xpose.msra.mxu0 0.0
    %149 = vmatprep.subr.mxu0 0.0
    %150 = vmatpush2.xpose.msra.mxu0 0.0
    %151 = vmatprep.subr.mxu0 0.0
    %152 = vmatpush2.xpose.msra.mxu0 0.0
    %153 = vmatprep.subr.mxu0 0.0
    %154 = vmatpush2.xpose.msra.mxu0 0.0
    %155 = vmatprep.subr.mxu0 0.0
    %156 = vmatpush2.xpose.msra.mxu0 0.0
    %157 = vmatprep.subr.mxu0 0.0
    %158 = vmatpush2.xpose.msra.mxu0 0.0
    %159 = vmatprep.subr.mxu0 0.0
    %160 = vmatpush2.xpose.msra.mxu0 0.0
    %161 = vmatprep.subr.mxu0 0.0
    %162 = vmatpush2.xpose.msra.mxu0 0.0
    %163 = vmatprep.subr.mxu0 0.0
    %164 = vmatpush2.xpose.msra.mxu0 0.0
    %165 = vmatprep.subr.mxu0 0.0
    %166 = vmatpush2.xpose.msra.mxu0 0.0
    %167 = vmatprep.subr.mxu0 0.0
    %168 = vmatpush2.xpose.msra.mxu0 0.0
    %169 = vmatprep.subr.mxu0 0.0
    %170 = vmatpush2.xpose.msra.mxu0 0.0
    %171 = vmatprep.mubr.f32.mxu0 0.0
    %172 = vmatmul.mubr.f32.gmra.mxu0 %v29
    %v173 = vpop.f32.mrf.mxu0
    %v174 = vadd.f32 0.0, %v173
    %v175 = vpop.f32.mrf.mxu0
    %176 = vdwg.mxu0
    %v177 = vld [vmem:[%s1] sm:$0x1]
    %v178 = vld [vmem:[%s1 + $0x1] sm:$0x1]
    %vm179 = vcmp.gt.bf16.partialorder %v177, 1056980736
    %vm180 = vcmp.gt.bf16.partialorder %v178, 1056980736
    %v181 = vsel %vm179, 65537, 0
    %v182 = vsel %vm180, 65537, 0
    %v183 = vunpack.c.l.b16 %v181
    %v184 = vunpack.c.l.b16 %v182
    %vm185 = vcmp.ne.s32.totalorder %v183, 0
    %vm186 = vcmp.ne.s32.totalorder %v184, 0
    %v187 = vsel %vm185, -1e+30, %v101
    %v188 = vsel %vm186, -1e+30, %v174
    %vm189 = vcmask 57344
    %v190 = vsel %vm189, %v187, -inf
    %191 = vmax.xlane.f32.xlu0 %v190
    %v192 = vpop.xlane.xlu0 %191
    %v193 = vsel %vm189, %v188, -inf
    %194 = vmax.xlane.f32.xlu0 %v193
    %v195 = vpop.xlane.xlu0 %194
    %v196 = vsub.f32 %v187, %v192
    %v197 = vsub.f32 %v188, %v195
    %v198 = vmul.f32 %v196, 1.442695
    %v199 = vpow.pop %v198
    %v200 = vmul.f32 %v197, 1.442695
    %v201 = vpow.pop %v200
    %v202 = vsel %vm189, %v199, 0.0
    %203 = vadd.xlane.f32.xlu0 %v202
    %v204 = vpop.xlane.xlu0 %203
    %v205 = vsel %vm189, %v201, 0.0
    %206 = vadd.xlane.f32.xlu0 %v205
    %v207 = vpop.xlane.xlu0 %206
    %v208 = vrcp.pop %v204
    %v209 = vrcp.pop %v207
    %v210 = vmul.f32 %v199, %v208
    %v211 = vmul.f32 %v201, %v209
    %vm212 = vcmask 64512
    %v214 = vsel %vm212, %v210, 0
    %216 = vmatprep.subr.mxu0 0.0
    %217 = vmatpush1.msra.mxu0 0.0
    %218 = vmatprep.subr.mxu0 0.0
    %219 = vmatpush1.msra.mxu0 0.0
    %220 = vmatprep.subr.mxu0 0.0
    %221 = vmatpush1.msra.mxu0 0.0
    %222 = vmatprep.subr.mxu0 0.0
    %223 = vmatpush1.msra.mxu0 0.0
    %224 = vmatprep.subr.mxu0 0.0
    %225 = vmatpush1.msra.mxu0 0.0
    %226 = vmatprep.subr.mxu0 0.0
    %227 = vmatpush1.msra.mxu0 0.0
    %228 = vmatprep.subr.mxu0 0.0
    %229 = vmatpush1.msra.mxu0 0.0
    %230 = vmatprep.subr.mxu0 0.0
    %231 = vmatpush1.msra.mxu0 0.0
    %232 = vmatprep.subr.mxu0 0.0
    %233 = vmatpush1.msra.mxu0 0.0
    %234 = vmatprep.subr.mxu0 0.0
    %235 = vmatpush1.msra.mxu0 0.0
    %236 = vmatprep.subr.mxu0 0.0
    %237 = vmatpush1.msra.mxu0 0.0
    %238 = vmatprep.subr.mxu0 0.0
    %239 = vmatpush1.msra.mxu0 0.0
    %240 = vmatprep.subr.mxu0 0.0
    %241 = vmatpush1.msra.mxu0 0.0
    %242 = vmatprep.subr.mxu0 0.0
    %243 = vmatpush1.msra.mxu0 0.0
    %244 = vmatprep.subr.mxu0 0.0
    %245 = vmatpush1.msra.mxu0 0.0
    %246 = vmatprep.subr.mxu0 0.0
    %247 = vmatpush1.msra.mxu0 %v24
    %248 = vmatprep.subr.mxu0 0.0
    %249 = vmatpush2.msra.mxu0 0.0
    %250 = vmatprep.subr.mxu0 0.0
    %251 = vmatpush2.msra.mxu0 0.0
    %252 = vmatprep.subr.mxu0 0.0
    %253 = vmatpush2.msra.mxu0 0.0
    %254 = vmatprep.subr.mxu0 0.0
    %255 = vmatpush2.msra.mxu0 0.0
    %256 = vmatprep.subr.mxu0 0.0
    %257 = vmatpush2.msra.mxu0 0.0
    %258 = vmatprep.subr.mxu0 0.0
    %259 = vmatpush2.msra.mxu0 0.0
    %260 = vmatprep.subr.mxu0 0.0
    %261 = vmatpush2.msra.mxu0 0.0
    %262 = vmatprep.subr.mxu0 0.0
    %263 = vmatpush2.msra.mxu0 0.0
    %264 = vmatprep.subr.mxu0 0.0
    %265 = vmatpush2.msra.mxu0 0.0
    %266 = vmatprep.subr.mxu0 0.0
    %267 = vmatpush2.msra.mxu0 0.0
    %268 = vmatprep.subr.mxu0 0.0
    %269 = vmatpush2.msra.mxu0 0.0
    %270 = vmatprep.subr.mxu0 0.0
    %271 = vmatpush2.msra.mxu0 0.0
    %272 = vmatprep.subr.mxu0 0.0
    %273 = vmatpush2.msra.mxu0 0.0
    %274 = vmatprep.subr.mxu0 0.0
    %275 = vmatpush2.msra.mxu0 0.0
    %276 = vmatprep.subr.mxu0 0.0
    %277 = vmatpush2.msra.mxu0 0.0
    %278 = vmatprep.subr.mxu0 0.0
    %279 = vmatpush2.msra.mxu0 0.0
    %280 = vmatprep.mubr.f32.mxu0 0.0
    %281 = vmatmul.mubr.f32.gmra.mxu0 %v214
    %v282 = vpop.f32.mrf.mxu0
    %v283 = vadd.f32 0.0, %v282
    %v284 = vpop.f32.mrf.mxu0
    %285 = vdwg.mxu0
    %v287 = vsel %vm212, %v211, 0
    %289 = vmatprep.subr.mxu0 0.0
    %290 = vmatpush1.msra.mxu0 0.0
    %291 = vmatprep.subr.mxu0 0.0
    %292 = vmatpush1.msra.mxu0 0.0
    %293 = vmatprep.subr.mxu0 0.0
    %294 = vmatpush1.msra.mxu0 0.0
    %295 = vmatprep.subr.mxu0 0.0
    %296 = vmatpush1.msra.mxu0 0.0
    %297 = vmatprep.subr.mxu0 0.0
    %298 = vmatpush1.msra.mxu0 0.0
    %299 = vmatprep.subr.mxu0 0.0
    %300 = vmatpush1.msra.mxu0 0.0
    %301 = vmatprep.subr.mxu0 0.0
    %302 = vmatpush1.msra.mxu0 0.0
    %303 = vmatprep.subr.mxu0 0.0
    %304 = vmatpush1.msra.mxu0 0.0
    %305 = vmatprep.subr.mxu0 0.0
    %306 = vmatpush1.msra.mxu0 0.0
    %307 = vmatprep.subr.mxu0 0.0
    %308 = vmatpush1.msra.mxu0 0.0
    %309 = vmatprep.subr.mxu0 0.0
    %310 = vmatpush1.msra.mxu0 0.0
    %311 = vmatprep.subr.mxu0 0.0
    %312 = vmatpush1.msra.mxu0 0.0
    %313 = vmatprep.subr.mxu0 0.0
    %314 = vmatpush1.msra.mxu0 0.0
    %315 = vmatprep.subr.mxu0 0.0
    %316 = vmatpush1.msra.mxu0 0.0
    %317 = vmatprep.subr.mxu0 0.0
    %318 = vmatpush1.msra.mxu0 0.0
    %319 = vmatprep.subr.mxu0 0.0
    %320 = vmatpush1.msra.mxu0 %v25
    %321 = vmatprep.subr.mxu0 0.0
    %322 = vmatpush2.msra.mxu0 0.0
    %323 = vmatprep.subr.mxu0 0.0
    %324 = vmatpush2.msra.mxu0 0.0
    %325 = vmatprep.subr.mxu0 0.0
    %326 = vmatpush2.msra.mxu0 0.0
    %327 = vmatprep.subr.mxu0 0.0
    %328 = vmatpush2.msra.mxu0 0.0
    %329 = vmatprep.subr.mxu0 0.0
    %330 = vmatpush2.msra.mxu0 0.0
    %331 = vmatprep.subr.mxu0 0.0
    %332 = vmatpush2.msra.mxu0 0.0
    %333 = vmatprep.subr.mxu0 0.0
    %334 = vmatpush2.msra.mxu0 0.0
    %335 = vmatprep.subr.mxu0 0.0
    %336 = vmatpush2.msra.mxu0 0.0
    %337 = vmatprep.subr.mxu0 0.0
    %338 = vmatpush2.msra.mxu0 0.0
    %339 = vmatprep.subr.mxu0 0.0
    %340 = vmatpush2.msra.mxu0 0.0
    %341 = vmatprep.subr.mxu0 0.0
    %342 = vmatpush2.msra.mxu0 0.0
    %343 = vmatprep.subr.mxu0 0.0
    %344 = vmatpush2.msra.mxu0 0.0
    %345 = vmatprep.subr.mxu0 0.0
    %346 = vmatpush2.msra.mxu0 0.0
    %347 = vmatprep.subr.mxu0 0.0
    %348 = vmatpush2.msra.mxu0 0.0
    %349 = vmatprep.subr.mxu0 0.0
    %350 = vmatpush2.msra.mxu0 0.0
    %351 = vmatprep.subr.mxu0 0.0
    %352 = vmatpush2.msra.mxu0 0.0
    %353 = vmatprep.mubr.f32.mxu0 0.0
    %354 = vmatmul.mubr.f32.gmra.mxu0 %v287
    %v355 = vpop.f32.mrf.mxu0
    %v356 = vadd.f32 0.0, %v355
    %v357 = vpop.f32.mrf.mxu0
    %358 = vdwg.mxu0
    %vm359 = vcmask 253952
    %360 = vst.msk [vmem:[#allocation2] sm:$0x1] %vm359, %v283
    %361 = vst.msk [vmem:[#allocation2 + $0x1] sm:$0x1] %vm359, %v356
    %v362 = vld [vmem:[#allocation2] sm:$0x3]
    %v363 = vld [vmem:[%s3] sm:$0xff]
    %v364 = vld [vmem:[%s3 + $0x8] sm:$0xff]
    %v365 = vld [vmem:[%s3 + $0x10] sm:$0xff]
    %v366 = vld [vmem:[%s3 + $0x18] sm:$0xff]
    %v367 = vld [vmem:[%s4] sm:$0x1]
    %v369 = vlaneseq
    %v370 = vshrl.u32 %v369, 7
    %v371 = vsub.s32 0, %v370
    %v372 = vrot.slane %v367, %v371
    %v375 = vsel %vm27, %v362, 0
    %377 = vmatprep.subr.mxu0 0.0
    %378 = vmatpush1.msra.mxu0 0.0
    %379 = vmatprep.subr.mxu0 0.0
    %380 = vmatpush1.msra.mxu0 0.0
    %381 = vmatprep.subr.mxu0 0.0
    %382 = vmatpush1.msra.mxu0 0.0
    %383 = vmatprep.subr.mxu0 0.0
    %384 = vmatpush1.msra.mxu0 0.0
    %385 = vmatprep.subr.mxu0 0.0
    %386 = vmatpush1.msra.mxu0 0.0
    %387 = vmatprep.subr.mxu0 0.0
    %388 = vmatpush1.msra.mxu0 0.0
    %389 = vmatprep.subr.mxu0 0.0
    %390 = vmatpush1.msra.mxu0 0.0
    %391 = vmatprep.subr.mxu0 0.0
    %392 = vmatpush1.msra.mxu0 0.0
    %393 = vmatprep.subr.mxu0 0.0
    %394 = vmatpush1.msra.mxu0 0.0
    %395 = vmatprep.subr.mxu0 0.0
    %396 = vmatpush1.msra.mxu0 0.0
    %397 = vmatprep.subr.mxu0 0.0
    %398 = vmatpush1.msra.mxu0 0.0
    %399 = vmatprep.subr.mxu0 0.0
    %400 = vmatpush1.msra.mxu0 0.0
    %401 = vmatprep.subr.mxu0 0.0
    %402 = vmatpush1.msra.mxu0 %v366
    %403 = vmatprep.subr.mxu0 0.0
    %404 = vmatpush1.msra.mxu0 %v365
    %405 = vmatprep.subr.mxu0 0.0
    %406 = vmatpush1.msra.mxu0 %v364
    %407 = vmatprep.subr.mxu0 0.0
    %408 = vmatpush1.msra.mxu0 %v363
    %409 = vmatprep.subr.mxu0 0.0
    %410 = vmatpush2.msra.mxu0 0.0
    %411 = vmatprep.subr.mxu0 0.0
    %412 = vmatpush2.msra.mxu0 0.0
    %413 = vmatprep.subr.mxu0 0.0
    %414 = vmatpush2.msra.mxu0 0.0
    %415 = vmatprep.subr.mxu0 0.0
    %416 = vmatpush2.msra.mxu0 0.0
    %417 = vmatprep.subr.mxu0 0.0
    %418 = vmatpush2.msra.mxu0 0.0
    %419 = vmatprep.subr.mxu0 0.0
    %420 = vmatpush2.msra.mxu0 0.0
    %421 = vmatprep.subr.mxu0 0.0
    %422 = vmatpush2.msra.mxu0 0.0
    %423 = vmatprep.subr.mxu0 0.0
    %424 = vmatpush2.msra.mxu0 0.0
    %425 = vmatprep.subr.mxu0 0.0
    %426 = vmatpush2.msra.mxu0 0.0
    %427 = vmatprep.subr.mxu0 0.0
    %428 = vmatpush2.msra.mxu0 0.0
    %429 = vmatprep.subr.mxu0 0.0
    %430 = vmatpush2.msra.mxu0 0.0
    %431 = vmatprep.subr.mxu0 0.0
    %432 = vmatpush2.msra.mxu0 0.0
    %433 = vmatprep.subr.mxu0 0.0
    %434 = vmatpush2.msra.mxu0 0.0
    %435 = vmatprep.subr.mxu0 0.0
    %436 = vmatpush2.msra.mxu0 0.0
    %437 = vmatprep.subr.mxu0 0.0
    %438 = vmatpush2.msra.mxu0 0.0
    %439 = vmatprep.subr.mxu0 0.0
    %440 = vmatpush2.msra.mxu0 0.0
    %441 = vmatprep.mubr.f32.mxu0 0.0
    %442 = vmatmul.mubr.f32.gmra.mxu0 %v375
    %v443 = vpop.f32.mrf.mxu0
    %v444 = vadd.f32 %v372, %v443
    %v445 = vpop.f32.mrf.mxu0
    %446 = vdwg.mxu0
    %447 = vst [vmem:[#allocation3] sm:$0x3] %v444
    // Predicated region
    $region22: #{attention_classifier.1} parent=1 // pred_check
      _
    $region23: #{attention_classifier.1} parent=1 // pred_check_branch
      %449 = sbr.rel (0) target = $region25
    $region24: #{attention_classifier.1} parent=1 // pred_region
      %s451 = ssub.s32 32, 32
      %452 = vsyncadd [#allocation4], %s451
      %s454 = sshll.u32 [#allocation3], 4
      %s455 = int_to_ptr.vmem [resolvable:$true] %s454
      %457 = dma.vmem_to_hbm [thread:$0]  %s455, 32, %s5, [#allocation4]
    $region25: #{attention_classifier.1} parent=1 // pred_fallthru
      _
    // Predicated region
    $region26: #{attention_classifier.1} parent=1 // pred_check
      _
    $region27: #{attention_classifier.1} parent=1 // pred_check_branch
      %459 = sbr.rel (0) target = $region29
    $region28: #{attention_classifier.1} parent=1 // pred_region
      %460 = dma.done [#allocation4], 32
    $region29: #{attention_classifier.1} parent=1 // pred_fallthru
      _
    %461 = vsyncpa [#allocation4], 1

</llo_original>
